<compile_context>
chip_gen: v7x
topology: tpu7x:2x2x1
jax: 0.10.0
libtpu: 0.0.40
codegen_flags: <defaults>
</compile_context>

<pallas_src>
import math
import functools

import jax
import jax.numpy as jnp
from jax import lax
from jax.experimental import pallas as pl
from jax.experimental.pallas import tpu as pltpu


def build_pe_table(d_model: int, max_len: int = 1000) -> jnp.ndarray:
    """Replicates the PyTorch __init__ buffer construction. Returns [max_len, 1, d_model] f32."""
    if d_model % 2 != 0:
        div_term = jnp.exp(
            jnp.arange(0, d_model + 1, 2, dtype=jnp.float32) * (-math.log(10000.0) / d_model)
        )
        width = d_model + 1
    else:
        div_term = jnp.exp(
            jnp.arange(0, d_model, 2, dtype=jnp.float32) * (-math.log(10000.0) / d_model)
        )
        width = d_model
    position = jnp.arange(max_len, dtype=jnp.float32)[:, None]          # [max_len, 1]
    angles = position * div_term[None, :]                               # [max_len, width//2]
    sin = jnp.sin(angles)
    cos = jnp.cos(angles)
    pe = jnp.stack([sin, cos], axis=-1).reshape(max_len, width)         # interleave sin/cos
    if d_model % 2 != 0:
        pe = pe[:, :-1]
    return pe[:, None, :]                                               # [max_len, 1, d_model]


def _pe_dropout_kernel(seed_ref, x_ref, pe_ref, o_ref, *,
                       tile_s: int, tile_d: int, total_b: int, total_d: int,
                       keep_threshold: int, keep_scale: float,
                       apply_dropout: bool, use_hw_prng: bool):
    # x_ref / o_ref: (tile_s, B, tile_d)   pe_ref: (tile_s, 1, tile_d), already in x.dtype.
    x = x_ref[...]
    y = x + pe_ref[...]                       # broadcast over batch (sublane axis): no tile

    if apply_dropout:
        if use_hw_prng:
            # Hardware PRNG: per-grid-step reseed, bits generated off the VALU critical path.
            step = pl.program_id(0) * pl.num_programs(1) + pl.program_id(1)
            pltpu.prng_seed(seed_ref[0] + step)
            bits = pltpu.bitcast(pltpu.prng_random_bits(y.shape), jnp.uint32)
            u24 = bits >> jnp.uint32(8)
        else:
            # Fallback (interpret / non-TPU backends only): trimmed counter hash keyed on the
            # GLOBAL element index, so the mask is tiling-invariant.
            # NOTE: gid wraps for tensors >= 2^31 elements; deterministic, low risk.
            s_loc = lax.broadcasted_iota(jnp.int32, y.shape, 0)
            b_loc = lax.broadcasted_iota(jnp.int32, y.shape, 1)
            d_loc = lax.broadcasted_iota(jnp.int32, y.shape, 2)
            gid32 = (s_loc * total_b + b_loc) * total_d + d_loc
            off = (pl.program_id(0) * (tile_s * total_b * total_d)
                   + pl.program_id(1) * tile_d).astype(jnp.uint32)
            gid = gid32.astype(jnp.uint32) + off
            h = gid * jnp.uint32(0x9E3779B1) + seed_ref[0].astype(jnp.uint32)
            h = (h ^ (h >> jnp.uint32(15))) * jnp.uint32(0x85EBCA6B)
            h = h ^ (h >> jnp.uint32(13))
            u24 = h >> jnp.uint32(8)
        # Integer-domain keep test: uniform 24-bit value >= p*2^24  <=>  keep with prob (1-p).
        keep = u24 >= jnp.uint32(keep_threshold)
        y = jnp.where(keep, y * keep_scale, 0.0)

    o_ref[...] = y.astype(o_ref.dtype)


def _tpu_generation_config():
    """-> (block_target_bytes, vmem_limit_bytes, input_buffer_count, min_grid_steps)."""
    try:
        info = pltpu.get_tpu_info()
        vmem = int(getattr(info, "vmem_capacity_bytes", 0)
                   or getattr(info, "vmem_size_bytes", 0) or 0)
    except Exception:
        vmem = 0
    if vmem >= 100 * 1024 * 1024:
        # v5e / v6e class (128 MiB VMEM): HBM-bound -> bigger blocks, deeper input buffering.
        return 4 * 1024 * 1024, 64 * 1024 * 1024, 3, 1
    if vmem > 0:
        # v7x class (64 MiB VMEM per TC): respect budget, guarantee >=4 steps for 2 TCs.
        return 2 * 1024 * 1024, 48 * 1024 * 1024, 2, 4
    # Unknown hardware: conservative defaults.
    return 2 * 1024 * 1024, 32 * 1024 * 1024, 2, 1


def _make_block_spec(block_shape, index_map, buffer_count):
    if buffer_count and buffer_count > 2:
        try:
            return pl.BlockSpec(block_shape, index_map,
                                pipeline_mode=pl.Buffered(buffer_count))
        except (AttributeError, TypeError):
            pass
    return pl.BlockSpec(block_shape, index_map)


def positional_encoding_forward(x, pe_table, *, p: float = 0.1,
                                seed: int = 0, training: bool = True):
    """x: [S, B, D]. pe_table: [max_len, 1, D]. Returns [S, B, D] (same dtype as x)."""
    S, B, D = x.shape
    itemsize = x.dtype.itemsize
    block_target, vmem_limit, n_buf, min_steps = _tpu_generation_config()

    # Cast pe to x.dtype once (no per-step convert, half the pe DMA stream for bf16).
    pe3 = pe_table[:S].astype(x.dtype)                                  # [S, 1, D]

    # Tile over sequence; add a lane-axis (D) grid dim only when one row exceeds the target.
    row_bytes = B * D * itemsize
    if row_bytes <= block_target:
        tile_d = D
        tile_s = int(max(1, min(S, block_target // max(1, row_bytes))))
    else:
        tile_s = 1
        if D >= 256:
            tile_d = int(min(D, max(128, ((block_target // (B * itemsize)) // 128) * 128)))
        else:
            tile_d = D  # TODO(synk): very large B with small D would also need batch-axis tiling
    if min_steps > 1:
        tile_s = max(1, min(tile_s, -(-S // min_steps)))                # keep both v7x TCs busy

    grid = (pl.cdiv(S, tile_s), pl.cdiv(D, tile_d))

    apply_dropout = bool(training and p > 0.0)
    use_hw_prng = jax.default_backend() == "tpu"

    kernel = functools.partial(
        _pe_dropout_kernel,
        tile_s=tile_s, tile_d=tile_d, total_b=B, total_d=D,
        keep_threshold=int(round(p * (1 << 24))),
        keep_scale=(1.0 / (1.0 - p)) if p < 1.0 else 0.0,
        apply_dropout=apply_dropout,
        use_hw_prng=use_hw_prng,
    )
    seed_arr = jnp.array([seed], dtype=jnp.int32)

    grid_spec = pltpu.PrefetchScalarGridSpec(
        num_scalar_prefetch=1,
        grid=grid,
        in_specs=[
            _make_block_spec((tile_s, B, tile_d), lambda i, j, seed_ref: (i, 0, j), n_buf),
            pl.BlockSpec((tile_s, 1, tile_d), lambda i, j, seed_ref: (i, 0, j)),
        ],
        out_specs=pl.BlockSpec((tile_s, B, tile_d), lambda i, j, seed_ref: (i, 0, j)),
    )

    return pl.pallas_call(
        kernel,
        out_shape=jax.ShapeDtypeStruct((S, B, D), x.dtype),
        grid_spec=grid_spec,
        compiler_params=pltpu.CompilerParams(
            dimension_semantics=("parallel", "parallel"),   # independent tiles; megacore-safe
            vmem_limit_bytes=vmem_limit,
        ),
    )(seed_arr, x, pe3)


if __name__ == "__main__":
    key = jax.random.PRNGKey(0)
    S, B, D = 8, 2, 32                      # seq_len, batch, embedding_dim
    x = jax.random.normal(key, (S, B, D), dtype=jnp.float32)

    pe_table = build_pe_table(d_model=D, max_len=1000)

    # Training-mode forward (dropout p=0.1, deterministic seed).
    out = positional_encoding_forward(x, pe_table, p=0.1, seed=0, training=True)
    out = jax.block_until_ready(out)

    # Eval-mode forward (dropout is identity): out_eval == x + pe[:S]
    out_eval = positional_encoding_forward(x, pe_table, p=0.1, seed=0, training=False)
    out_eval = jax.block_until_ready(out_eval)

    ref = x + pe_table[:S]
    assert out.shape == (S, B, D)
    assert jnp.allclose(out_eval, ref, atol=1e-5), "eval-mode mismatch vs reference"

    # Training mode: every element is either dropped (0) or kept and scaled by 1/(1-p).
    scale = 1.0 / (1.0 - 0.1)
    ok = jnp.all(jnp.isclose(out, 0.0, atol=1e-6) | jnp.isclose(out, ref * scale, atol=1e-4))
    assert bool(ok), "training-mode dropout output is not {0, (x+pe)/(1-p)}"

    print("KERNEL_OK")
</pallas_src>

<mosaic_0001>
module attributes {stable_mosaic.version = 11 : i64} {
  func.func @_pe_dropout_kernel(%arg0: i32, %arg1: i32, %arg2: memref<1xi32, #tpu.memory_space<smem>>, %arg3: memref<8x2x32xf32, #tpu.memory_space<vmem>>, %arg4: memref<8x1x32xf32, #tpu.memory_space<vmem>>, %arg5: memref<8x2x32xf32, #tpu.memory_space<vmem>>) attributes {dimension_semantics = [#tpu.dimension_semantics<parallel>, #tpu.dimension_semantics<parallel>], iteration_bounds = array<i64: 1, 1>, scalar_prefetch = 1 : i64, scratch_operands = 0 : i64, tpu.core_type = #tpu.core_type<tc>, window_params = [{transform_indices = @transform_0, window_bounds = array<i64: 8, 2, 32>}, {transform_indices = @transform_1, window_bounds = array<i64: 8, 1, 32>}, {transform_indices = @transform_2, window_bounds = array<i64: 8, 2, 32>}]} {
    %c0 = arith.constant 0 : index
    %c0_0 = arith.constant 0 : index
    %c0_1 = arith.constant 0 : index
    %0 = vector.load %arg3[%c0, %c0_0, %c0_1] : memref<8x2x32xf32, #tpu.memory_space<vmem>>, vector<8x2x32xf32>
    %c0_2 = arith.constant 0 : index
    %c0_3 = arith.constant 0 : index
    %c0_4 = arith.constant 0 : index
    %1 = vector.load %arg4[%c0_2, %c0_3, %c0_4] : memref<8x1x32xf32, #tpu.memory_space<vmem>>, vector<8x1x32xf32>
    %2 = vector.broadcast %1 : vector<8x1x32xf32> to vector<8x2x32xf32>
    %3 = arith.addf %0, %2 : vector<8x2x32xf32>
    %4 = tpu.iota {dimensions = array<i32: 0>} : vector<8x2x32xi32>
    %5 = tpu.iota {dimensions = array<i32: 1>} : vector<8x2x32xi32>
    %6 = tpu.iota {dimensions = array<i32: 2>} : vector<8x2x32xi32>
    %c2_i32 = arith.constant 2 : i32
    %7 = vector.broadcast %c2_i32 : i32 to vector<8x2x32xi32>
    %8 = arith.muli %4, %7 : vector<8x2x32xi32>
    %9 = arith.addi %8, %5 : vector<8x2x32xi32>
    %c32_i32 = arith.constant 32 : i32
    %10 = vector.broadcast %c32_i32 : i32 to vector<8x2x32xi32>
    %11 = arith.muli %9, %10 : vector<8x2x32xi32>
    %12 = arith.addi %11, %6 : vector<8x2x32xi32>
    %c512_i32 = arith.constant 512 : i32
    %13 = arith.muli %arg0, %c512_i32 : i32
    %c32_i32_5 = arith.constant 32 : i32
    %14 = arith.muli %arg1, %c32_i32_5 : i32
    %15 = arith.addi %13, %14 : i32
    %16 = vector.broadcast %15 : i32 to vector<8x2x32xi32>
    %17 = arith.addi %12, %16 : vector<8x2x32xi32>
    %c-1640531535_i32 = arith.constant -1640531535 : i32
    %18 = vector.broadcast %c-1640531535_i32 : i32 to vector<8x2x32xi32>
    %19 = arith.muli %17, %18 : vector<8x2x32xi32>
    %c0_6 = arith.constant 0 : index
    %20 = memref.load %arg2[%c0_6] : memref<1xi32, #tpu.memory_space<smem>>
    %21 = vector.broadcast %20 : i32 to vector<8x2x32xi32>
    %22 = arith.addi %19, %21 : vector<8x2x32xi32>
    %c15_i32 = arith.constant 15 : i32
    %23 = vector.broadcast %c15_i32 : i32 to vector<8x2x32xi32>
    %24 = arith.shrui %22, %23 : vector<8x2x32xi32>
    %25 = arith.xori %22, %24 : vector<8x2x32xi32>
    %c-2048144789_i32 = arith.constant -2048144789 : i32
    %26 = vector.broadcast %c-2048144789_i32 : i32 to vector<8x2x32xi32>
    %27 = arith.muli %25, %26 : vector<8x2x32xi32>
    %c13_i32 = arith.constant 13 : i32
    %28 = vector.broadcast %c13_i32 : i32 to vector<8x2x32xi32>
    %29 = arith.shrui %27, %28 : vector<8x2x32xi32>
    %30 = arith.xori %27, %29 : vector<8x2x32xi32>
    %c8_i32 = arith.constant 8 : i32
    %31 = vector.broadcast %c8_i32 : i32 to vector<8x2x32xi32>
    %32 = arith.shrui %30, %31 : vector<8x2x32xi32>
    %c1677722_i32 = arith.constant 1677722 : i32
    %33 = vector.broadcast %c1677722_i32 : i32 to vector<8x2x32xi32>
    %34 = arith.cmpi uge, %32, %33 : vector<8x2x32xi32>
    %cst = arith.constant 1.11111116 : f32
    %35 = vector.broadcast %cst : f32 to vector<8x2x32xf32>
    %36 = arith.mulf %3, %35 : vector<8x2x32xf32>
    %cst_7 = arith.constant 0.000000e+00 : f32
    %37 = vector.broadcast %cst_7 : f32 to vector<8x2x32xf32>
    %38 = arith.select %34, %36, %37 : vector<8x2x32xi1>, vector<8x2x32xf32>
    %c0_8 = arith.constant 0 : index
    %c0_9 = arith.constant 0 : index
    %c0_10 = arith.constant 0 : index
    %39 = vector.load %arg5[%c0_8, %c0_9, %c0_10] : memref<8x2x32xf32, #tpu.memory_space<vmem>>, vector<8x2x32xf32>
    tpu.vector_store %arg5[%c0_8, %c0_9, %c0_10], %38 {strides = array<i32>} : memref<8x2x32xf32, #tpu.memory_space<vmem>>, vector<8x2x32xf32>,
    return
  }
  func.func @transform_0(%arg0: i32, %arg1: i32, %arg2: memref<1xi32, #tpu.memory_space<smem>>) -> (i32, i32, i32) {
    %c0_i32 = arith.constant 0 : i32
    %c0_i32_0 = arith.constant 0 : i32
    return %arg0, %c0_i32, %arg1 : i32, i32, i32
  }
  func.func @transform_1(%arg0: i32, %arg1: i32, %arg2: memref<1xi32, #tpu.memory_space<smem>>) -> (i32, i32, i32) {
    %c0_i32 = arith.constant 0 : i32
    %c0_i32_0 = arith.constant 0 : i32
    return %arg0, %c0_i32, %arg1 : i32, i32, i32
  }
  func.func @transform_2(%arg0: i32, %arg1: i32, %arg2: memref<1xi32, #tpu.memory_space<smem>>) -> (i32, i32, i32) {
    %c0_i32 = arith.constant 0 : i32
    %c0_i32_0 = arith.constant 0 : i32
    return %arg0, %c0_i32, %arg1 : i32, i32, i32
  }
}

</mosaic_0001>

<llo_original>
// kernel: tpu_custom_call.1
$region0: #{tpu_custom_call.1}
  #allocation0 [shape = 'u32[]', space=smem, size = 0x4, offset = 0x4, fixed_abs, tag = 'smem constant byte address 0x4 - core index']
  #allocation1 [shape = 'u32[144,128]{1,0:T(1,128)}', space=vmem, size = 0x12000, scoped, tag = 'internal scratch']
  #allocation2 [shape = 's32[1]{0}', space=sflag, size = 0x4, scoped, tag = 'scoped memory for tpu_custom_call.1']
  #allocation3 [shape = 's32[1]{0:T(128)S(6)}', space=smem, size = 0x200, scoped, tag = 'prefetched SMEM operand 0']
  %s0 = inlined_call_operand.<no memory space> [shape: s32[1], index: 0, kind: input, shape index: {}]
  %s1 = inlined_call_operand.hbm [shape: f32[8,2,32], index: 1, kind: input, shape index: {}]
  %s2 = inlined_call_operand.hbm [shape: f32[8,1,32], index: 2, kind: input, shape index: {}]
  %s3 = inlined_call_operand.hbm [shape: f32[8,2,32], index: 3, kind: output, shape index: {}]
  %s4 = sld [smem:[#allocation0]]
  $region26: #{tpu_custom_call.1} parent=0
    _
  %s6 = ssub.s32 1, %s4
  %s7 = scalar_select 0, %s6, %s4
  %8 = sst [smem:[#allocation3]] %s0
  $region1: #{tpu_custom_call.1} parent=0
    #allocation4 [shape = 'u8[8192]{0}', space=vmem, size = 0x2000, scoped, tag = 'input window, operand 1, single buffered']
    #allocation5 [shape = 's32[1]{0}', space=sflag, size = 0x4, scoped, tag = 'scoped memory for tpu_custom_call.1']
    #allocation6 [shape = 's32[1]{0}', space=sflag, size = 0x4, scoped, tag = 'scoped memory for tpu_custom_call.1']
    #allocation7 [shape = 'u8[4096]{0}', space=vmem, size = 0x1000, scoped, tag = 'input window, operand 2, single buffered']
    #allocation8 [shape = 's32[1]{0}', space=sflag, size = 0x4, scoped, tag = 'scoped memory for tpu_custom_call.1']
    #allocation9 [shape = 'u8[8192]{0}', space=vmem, size = 0x2000, scoped, tag = 'output window, operand 0, single buffered']
    %9 = vsyncpa [#allocation5], 0
    %10 = vsyncpa [#allocation8], 0
    %11 = vsyncpa [#allocation6], 0
    // Predicated region
    $region2: #{tpu_custom_call.1} parent=1 // pred_check
      _
    $region3: #{tpu_custom_call.1} parent=1 // pred_check_branch
      %13 = sbr.rel (0) target = $region5
    $region4: #{tpu_custom_call.1} parent=1 // pred_region
      %s15 = ssub.s32 256, 256
      %16 = vsyncadd [#allocation5], %s15
      %s17 = sshll.u32 [#allocation4], 4
      %s18 = int_to_ptr.vmem [resolvable:$true] %s17
      %23 = dma.hbm_to_vmem [thread:$0]  %s1, 256, %s18, [#allocation5], 32, 32, 2
    $region5: #{tpu_custom_call.1} parent=1 // pred_fallthru
      _
    // Predicated region
    $region6: #{tpu_custom_call.1} parent=1 // pred_check
      _
    $region7: #{tpu_custom_call.1} parent=1 // pred_check_branch
      %25 = sbr.rel (0) target = $region9
    $region8: #{tpu_custom_call.1} parent=1 // pred_region
      %s27 = ssub.s32 128, 128
      %28 = vsyncadd [#allocation8], %s27
      %s29 = sshll.u32 [#allocation7], 4
      %s30 = int_to_ptr.vmem [resolvable:$true] %s29
      %35 = dma.hbm_to_vmem [thread:$0]  %s2, 128, %s30, [#allocation8], 16, 16, 1
    $region9: #{tpu_custom_call.1} parent=1 // pred_fallthru
      _
    // Predicated region
    $region10: #{tpu_custom_call.1} parent=1 // pred_check
      _
    $region11: #{tpu_custom_call.1} parent=1 // pred_check_branch
      %37 = sbr.rel (0) target = $region13
    $region12: #{tpu_custom_call.1} parent=1 // pred_region
      %38 = dma.done [#allocation5], 256
    $region13: #{tpu_custom_call.1} parent=1 // pred_fallthru
      _
    // Predicated region
    $region14: #{tpu_custom_call.1} parent=1 // pred_check
      _
    $region15: #{tpu_custom_call.1} parent=1 // pred_check_branch
      %40 = sbr.rel (0) target = $region17
    $region16: #{tpu_custom_call.1} parent=1 // pred_region
      %41 = dma.done [#allocation8], 128
    $region17: #{tpu_custom_call.1} parent=1 // pred_fallthru
      _
    %v42 = vld [vmem:[#allocation4] sm:$0x3]
    %v43 = vld [vmem:[#allocation4 + $0x2] sm:$0x3]
    %v44 = vld [vmem:[#allocation4 + $0x4] sm:$0x3]
    %v45 = vld [vmem:[#allocation4 + $0x6] sm:$0x3]
    %v46 = vld [vmem:[#allocation4 + $0x8] sm:$0x3]
    %v47 = vld [vmem:[#allocation4 + $0xa] sm:$0x3]
    %v48 = vld [vmem:[#allocation4 + $0xc] sm:$0x3]
    %v49 = vld [vmem:[#allocation4 + $0xe] sm:$0x3]
    %v50 = vld [vmem:[#allocation7] sm:$0x1]
    %v51 = vld [vmem:[#allocation7 + $0x1] sm:$0x1]
    %v52 = vld [vmem:[#allocation7 + $0x2] sm:$0x1]
    %v53 = vld [vmem:[#allocation7 + $0x3] sm:$0x1]
    %v54 = vld [vmem:[#allocation7 + $0x4] sm:$0x1]
    %v55 = vld [vmem:[#allocation7 + $0x5] sm:$0x1]
    %v56 = vld [vmem:[#allocation7 + $0x6] sm:$0x1]
    %v57 = vld [vmem:[#allocation7 + $0x7] sm:$0x1]
    %v66 = vlaneseq
    %v67 = vshrl.u32 %v66, 7
    %v68 = vsub.s32 0, %v67
    %v69 = vrot.slane %v50, %v68
    %v70 = vlaneseq
    %v71 = vshrl.u32 %v70, 7
    %v72 = vsub.s32 0, %v71
    %v73 = vrot.slane %v51, %v72
    %v74 = vlaneseq
    %v75 = vshrl.u32 %v74, 7
    %v76 = vsub.s32 0, %v75
    %v77 = vrot.slane %v52, %v76
    %v78 = vlaneseq
    %v79 = vshrl.u32 %v78, 7
    %v80 = vsub.s32 0, %v79
    %v81 = vrot.slane %v53, %v80
    %v82 = vlaneseq
    %v83 = vshrl.u32 %v82, 7
    %v84 = vsub.s32 0, %v83
    %v85 = vrot.slane %v54, %v84
    %v86 = vlaneseq
    %v87 = vshrl.u32 %v86, 7
    %v88 = vsub.s32 0, %v87
    %v89 = vrot.slane %v55, %v88
    %v90 = vlaneseq
    %v91 = vshrl.u32 %v90, 7
    %v92 = vsub.s32 0, %v91
    %v93 = vrot.slane %v56, %v92
    %v94 = vlaneseq
    %v95 = vshrl.u32 %v94, 7
    %v96 = vsub.s32 0, %v95
    %v97 = vrot.slane %v57, %v96
    %v106 = vadd.f32 %v42, %v69
    %v107 = vadd.f32 %v43, %v73
    %v108 = vadd.f32 %v44, %v77
    %v109 = vadd.f32 %v45, %v81
    %v110 = vadd.f32 %v46, %v85
    %v111 = vadd.f32 %v47, %v89
    %v112 = vadd.f32 %v48, %v93
    %v113 = vadd.f32 %v49, %v97
    %v114 = vlaneseq
    %v115 = vshrl.u32 %v114, 7
    %v116 = vlaneseq
    %v117 = vand.u32 %v116, 127
    %v118 = vadd.s32 %v115, 2
    %v119 = vadd.s32 %v115, 4
    %v120 = vadd.s32 %v115, 6
    %v121 = vadd.s32 %v115, 8
    %v122 = vadd.s32 %v115, 10
    %v123 = vadd.s32 %v115, 12
    %v124 = vadd.s32 %v115, 14
    %v125 = vmul.u32 %v115, 32
    %v126 = vmul.u32 %v118, 32
    %v127 = vmul.u32 %v119, 32
    %v128 = vmul.u32 %v120, 32
    %v129 = vmul.u32 %v121, 32
    %v130 = vmul.u32 %v122, 32
    %v131 = vmul.u32 %v123, 32
    %v132 = vmul.u32 %v124, 32
    %v133 = vadd.s32 %v125, %v117
    %v134 = vadd.s32 %v126, %v117
    %v135 = vadd.s32 %v127, %v117
    %v136 = vadd.s32 %v128, %v117
    %v137 = vadd.s32 %v129, %v117
    %v138 = vadd.s32 %v130, %v117
    %v139 = vadd.s32 %v131, %v117
    %v140 = vadd.s32 %v132, %v117
    %s141 = smul.u32 0, 512
    %s142 = smul.u32 0, 32
    %s143 = sadd.s32 %s141, %s142
    %v144 = vstv %s143
    %v145 = vadd.s32 %v133, %v144
    %v146 = vadd.s32 %v134, %v144
    %v147 = vadd.s32 %v135, %v144
    %v148 = vadd.s32 %v136, %v144
    %v149 = vadd.s32 %v137, %v144
    %v150 = vadd.s32 %v138, %v144
    %v151 = vadd.s32 %v139, %v144
    %v152 = vadd.s32 %v140, %v144
    %v153 = vmul.u32 %v145, 2654435761
    %v154 = vmul.u32 %v146, 2654435761
    %v155 = vmul.u32 %v147, 2654435761
    %v156 = vmul.u32 %v148, 2654435761
    %v157 = vmul.u32 %v149, 2654435761
    %v158 = vmul.u32 %v150, 2654435761
    %v159 = vmul.u32 %v151, 2654435761
    %v160 = vmul.u32 %v152, 2654435761
    %s161 = sld [smem:[#allocation3]]
    %v162 = vstv %s161
    %v163 = vadd.s32 %v153, %v162
    %v164 = vadd.s32 %v154, %v162
    %v165 = vadd.s32 %v155, %v162
    %v166 = vadd.s32 %v156, %v162
    %v167 = vadd.s32 %v157, %v162
    %v168 = vadd.s32 %v158, %v162
    %v169 = vadd.s32 %v159, %v162
    %v170 = vadd.s32 %v160, %v162
    %v171 = vshrl.u32 %v163, 15
    %v172 = vshrl.u32 %v164, 15
    %v173 = vshrl.u32 %v165, 15
    %v174 = vshrl.u32 %v166, 15
    %v175 = vshrl.u32 %v167, 15
    %v176 = vshrl.u32 %v168, 15
    %v177 = vshrl.u32 %v169, 15
    %v178 = vshrl.u32 %v170, 15
    %v179 = vxor.u32 %v163, %v171
    %v180 = vxor.u32 %v164, %v172
    %v181 = vxor.u32 %v165, %v173
    %v182 = vxor.u32 %v166, %v174
    %v183 = vxor.u32 %v167, %v175
    %v184 = vxor.u32 %v168, %v176
    %v185 = vxor.u32 %v169, %v177
    %v186 = vxor.u32 %v170, %v178
    %v187 = vmul.u32 %v179, 2246822507
    %v188 = vmul.u32 %v180, 2246822507
    %v189 = vmul.u32 %v181, 2246822507
    %v190 = vmul.u32 %v182, 2246822507
    %v191 = vmul.u32 %v183, 2246822507
    %v192 = vmul.u32 %v184, 2246822507
    %v193 = vmul.u32 %v185, 2246822507
    %v194 = vmul.u32 %v186, 2246822507
    %v195 = vshrl.u32 %v187, 13
    %v196 = vshrl.u32 %v188, 13
    %v197 = vshrl.u32 %v189, 13
    %v198 = vshrl.u32 %v190, 13
    %v199 = vshrl.u32 %v191, 13
    %v200 = vshrl.u32 %v192, 13
    %v201 = vshrl.u32 %v193, 13
    %v202 = vshrl.u32 %v194, 13
    %v203 = vxor.u32 %v187, %v195
    %v204 = vxor.u32 %v188, %v196
    %v205 = vxor.u32 %v189, %v197
    %v206 = vxor.u32 %v190, %v198
    %v207 = vxor.u32 %v191, %v199
    %v208 = vxor.u32 %v192, %v200
    %v209 = vxor.u32 %v193, %v201
    %v210 = vxor.u32 %v194, %v202
    %v211 = vshrl.u32 %v203, 8
    %v212 = vshrl.u32 %v204, 8
    %v213 = vshrl.u32 %v205, 8
    %v214 = vshrl.u32 %v206, 8
    %v215 = vshrl.u32 %v207, 8
    %v216 = vshrl.u32 %v208, 8
    %v217 = vshrl.u32 %v209, 8
    %v218 = vshrl.u32 %v210, 8
    %vm219 = vcmp.ge.u32.totalorder %v211, 1677722
    %vm220 = vcmp.ge.u32.totalorder %v212, 1677722
    %vm221 = vcmp.ge.u32.totalorder %v213, 1677722
    %vm222 = vcmp.ge.u32.totalorder %v214, 1677722
    %vm223 = vcmp.ge.u32.totalorder %v215, 1677722
    %vm224 = vcmp.ge.u32.totalorder %v216, 1677722
    %vm225 = vcmp.ge.u32.totalorder %v217, 1677722
    %vm226 = vcmp.ge.u32.totalorder %v218, 1677722
    %v227 = vmul.f32 %v106, 1.1111112
    %v228 = vmul.f32 %v107, 1.1111112
    %v229 = vmul.f32 %v108, 1.1111112
    %v230 = vmul.f32 %v109, 1.1111112
    %v231 = vmul.f32 %v110, 1.1111112
    %v232 = vmul.f32 %v111, 1.1111112
    %v233 = vmul.f32 %v112, 1.1111112
    %v234 = vmul.f32 %v113, 1.1111112
    %v235 = vsel %vm219, %v227, 0.0
    %v236 = vsel %vm220, %v228, 0.0
    %v237 = vsel %vm221, %v229, 0.0
    %v238 = vsel %vm222, %v230, 0.0
    %v239 = vsel %vm223, %v231, 0.0
    %v240 = vsel %vm224, %v232, 0.0
    %v241 = vsel %vm225, %v233, 0.0
    %v242 = vsel %vm226, %v234, 0.0
    %vm243 = vcmask 254976
    %244 = vst.msk [vmem:[#allocation9] sm:$0x3] %vm243, %v235
    %245 = vst.msk [vmem:[#allocation9 + $0x2] sm:$0x3] %vm243, %v236
    %246 = vst.msk [vmem:[#allocation9 + $0x4] sm:$0x3] %vm243, %v237
    %247 = vst.msk [vmem:[#allocation9 + $0x6] sm:$0x3] %vm243, %v238
    %248 = vst.msk [vmem:[#allocation9 + $0x8] sm:$0x3] %vm243, %v239
    %249 = vst.msk [vmem:[#allocation9 + $0xa] sm:$0x3] %vm243, %v240
    %250 = vst.msk [vmem:[#allocation9 + $0xc] sm:$0x3] %vm243, %v241
    %251 = vst.msk [vmem:[#allocation9 + $0xe] sm:$0x3] %vm243, %v242
    // Predicated region
    $region18: #{tpu_custom_call.1} parent=1 // pred_check
      _
    $region19: #{tpu_custom_call.1} parent=1 // pred_check_branch
      %253 = sbr.rel (0) target = $region21
    $region20: #{tpu_custom_call.1} parent=1 // pred_region
      %s255 = ssub.s32 256, 256
      %256 = vsyncadd [#allocation6], %s255
      %s257 = sshll.u32 [#allocation9], 4
      %s258 = int_to_ptr.vmem [resolvable:$true] %s257
      %263 = dma.vmem_to_hbm [thread:$0]  %s258, 256, %s3, [#allocation6], 32, 32, 2
    $region21: #{tpu_custom_call.1} parent=1 // pred_fallthru
      _
    // Predicated region
    $region22: #{tpu_custom_call.1} parent=1 // pred_check
      _
    $region23: #{tpu_custom_call.1} parent=1 // pred_check_branch
      %265 = sbr.rel (0) target = $region25
    $region24: #{tpu_custom_call.1} parent=1 // pred_region
      %266 = dma.done [#allocation6], 256
    $region25: #{tpu_custom_call.1} parent=1 // pred_fallthru
      _
    %267 = vsyncpa [#allocation5], 1
    %268 = vsyncpa [#allocation8], 1
    %269 = vsyncpa [#allocation6], 1

</llo_original>
